<compile_context>
chip_gen: v6e
topology: v6e:2x2x1
jax: 0.10.0
libtpu: 0.0.40
codegen_flags: <defaults>
</compile_context>

<pallas_src>
import jax
import jax.numpy as jnp
from jax.experimental import pallas as pl
from jax.experimental.pallas import tpu as pltpu


def _round_up(n: int, m: int) -> int:
    return ((n + m - 1) // m) * m


def _vmem_capacity_bytes() -> int:
    """Generation-aware VMEM capacity; conservative fallback (v7x = 64 MiB)."""
    try:
        info = pltpu.get_tpu_info()
        cap = getattr(info, "vmem_capacity_bytes", None)
        if cap:
            return int(cap)
    except Exception:
        pass
    return 64 << 20


def _net_kernel(x_ref, w1t_ref, b1_ref, w2t_ref, b2_ref, w3t_ref, b3_ref, o_ref):
    # fc1: (12, F) @ (F, TB) on the MXU (bf16 in, f32 acc) + bias + ReLU.
    h = jnp.dot(w1t_ref[...], x_ref[...], preferred_element_type=jnp.float32)
    h = jnp.maximum(h + b1_ref[...], 0.0)                          # (12, TB)

    # fc2: LayerNorm over the 12-feature (sublane) axis, eps=1e-5, biased var.
    # The elementwise-affine (gamma/beta) is folded into w2t/b2 in the wrapper.
    mean = jnp.mean(h, axis=0, keepdims=True)                      # (1, TB)
    cent = h - mean
    var = jnp.mean(cent * cent, axis=0, keepdims=True)
    n = (cent * jax.lax.rsqrt(var + 1e-5)).astype(jnp.bfloat16)    # (12, TB)

    # fc3: Dropout(p=0.2) — inference/eval semantics: identity.
    # TODO(synk): training-mode dropout (pltpu.prng_seed + stateful_bernoulli) not implemented.

    # fc4: (6, 12) @ (12, TB) + bias; sigmoid as a single EUP tanh.
    z = jnp.dot(w2t_ref[...], n, preferred_element_type=jnp.float32) + b2_ref[...]
    h2 = (0.5 * (jnp.tanh(0.5 * z) + 1.0)).astype(jnp.bfloat16)    # (6, TB)

    # fc5: (out, 6) @ (6, TB) + bias; softmax over the class (sublane) axis.
    logits = jnp.dot(w3t_ref[...], h2, preferred_element_type=jnp.float32) + b3_ref[...]
    m = jnp.max(logits, axis=0, keepdims=True)
    e = jnp.exp(logits - m)
    den = jnp.sum(e, axis=0, keepdims=True)
    # Exact divide (not approx reciprocal) so probabilities sum to 1.
    o_ref[...] = (e / den).astype(o_ref.dtype)                     # (out, TB)


def net_forward(x, params, *, tb_max=4096):
    """x: (B, input_size) float32. params: dict of weights (see init_params)."""
    B, F = x.shape
    out_size = params["w3"].shape[1]

    # --- generation-aware VMEM budget ------------------------------------
    vmem_cap = _vmem_capacity_bytes()
    vmem_limit = int(min(vmem_cap // 2, 64 << 20))   # 32 MiB on v7x, 64 MiB on v5e/v6e
    tile_budget = vmem_limit // 2                    # headroom for scratch / scheduler

    # --- choose batch tile TB (lane-padded accounting) --------------------
    # Per batch column (lane): double-buffered bf16 x tile + double-buffered
    # f32 out tile + materialized f32/bf16 intermediates (h, cent, n, z, h2,
    # logits, e, reduce temps) with sublane padding.
    per_col_bytes = (
        2 * 2 * _round_up(F, 16)            # x tile (bf16, 2 buffers)
        + 2 * 4 * _round_up(out_size, 8)    # out tile (f32, 2 buffers)
        + 640                               # intermediates (generous)
    )
    tb_budget = max(128, (tile_budget // per_col_bytes) // 128 * 128)

    B_pad128 = _round_up(B, 128)
    # Aim for >= 8 grid steps when the batch allows (v7x megacore + pipelining).
    tb_split = max(128, (B_pad128 // 8) // 128 * 128)
    TB = max(128, (min(tb_budget, tb_max, tb_split, B_pad128) // 128) * 128)
    B_pad = _round_up(B, TB)
    grid = (B_pad // TB,)

    # --- wrapper-side layout / folding ------------------------------------
    xq = x.astype(jnp.bfloat16)
    if B_pad != B:
        xq = jnp.pad(xq, ((0, B_pad - B), (0, 0)))
    xt = xq.T                                                    # (F, B_pad), batch on lanes

    gamma = params["gamma"].reshape(-1)                          # (12,)
    beta = params["beta"].reshape(-1)                            # (12,)
    w2p = gamma[:, None] * params["w2"]                          # fold LN scale into fc4
    b2p = params["b2"].reshape(-1) + beta @ params["w2"]         # fold LN shift into fc4 bias

    w1t = params["w1"].T.astype(jnp.bfloat16)                    # (12, F)
    b1c = params["b1"].reshape(-1, 1).astype(jnp.float32)        # (12, 1)
    w2t = w2p.T.astype(jnp.bfloat16)                             # (6, 12)
    b2c = b2p.reshape(-1, 1).astype(jnp.float32)                 # (6, 1)
    w3t = params["w3"].T.astype(jnp.bfloat16)                    # (out, 6)
    b3c = params["b3"].reshape(-1, 1).astype(jnp.float32)        # (out, 1)

    def _resident(arr):
        # Full-shape block + constant index_map: loaded once, stays in VMEM.
        return pl.BlockSpec(arr.shape, lambda i: (0, 0))

    weight_bytes = (w1t.size * 2 + w2t.size * 2 + w3t.size * 2
                    + (b1c.size + b2c.size + b3c.size) * 4)
    cost = pl.CostEstimate(
        flops=2 * B_pad * (F * 12 + 12 * 6 + 6 * out_size),
        transcendentals=B_pad * (1 + 6 + out_size),              # rsqrt, tanh, exp
        bytes_accessed=B_pad * F * 2 + B_pad * out_size * 4 + weight_bytes,
    )

    out_t = pl.pallas_call(
        _net_kernel,
        out_shape=jax.ShapeDtypeStruct((out_size, B_pad), jnp.float32),
        grid_spec=pltpu.PrefetchScalarGridSpec(
            num_scalar_prefetch=0,
            grid=grid,
            in_specs=[
                pl.BlockSpec((F, TB), lambda i: (0, i)),   # x tile (pipelined, lane-dense)
                _resident(w1t),
                _resident(b1c),
                _resident(w2t),
                _resident(b2c),
                _resident(w3t),
                _resident(b3c),
            ],
            out_specs=pl.BlockSpec((out_size, TB), lambda i: (0, i)),
        ),
        compiler_params=pltpu.CompilerParams(
            dimension_semantics=("parallel",),   # megacore split on v7x
            vmem_limit_bytes=vmem_limit,
        ),
        cost_estimate=cost,
    )(xt, w1t, b1c, w2t, b2c, w3t, b3c)

    return out_t[:, :B].T                                        # (B, out_size)


def init_params(key, input_size, output_size):
    """PyTorch-style init.  Weights stored (in_features, out_features)."""
    ks = jax.random.split(key, 6)

    def linear(kw, kb, fan_in, fan_out):
        bound = 1.0 / jnp.sqrt(fan_in)
        w = jax.random.uniform(kw, (fan_in, fan_out), jnp.float32, -bound, bound)
        b = jax.random.uniform(kb, (1, fan_out), jnp.float32, -bound, bound)
        return w, b

    w1, b1 = linear(ks[0], ks[1], input_size, 12)
    w2, b2 = linear(ks[2], ks[3], 12, 6)
    w3, b3 = linear(ks[4], ks[5], 6, output_size)
    return {
        "w1": w1, "b1": b1,
        "gamma": jnp.ones((1, 12), jnp.float32),   # LayerNorm weight
        "beta": jnp.zeros((1, 12), jnp.float32),   # LayerNorm bias
        "w2": w2, "b2": b2,
        "w3": w3, "b3": b3,
    }


def _reference_forward(x, p):
    """Plain-JAX reference.  Uses the same bf16-quantized x/w1 as the kernel
    so the comparison isolates kernel correctness from the deliberate bf16
    input cast (remaining bf16 casts inside the kernel are covered by the
    test tolerances)."""
    xq = x.astype(jnp.bfloat16).astype(jnp.float32)
    w1q = p["w1"].astype(jnp.bfloat16).astype(jnp.float32)
    h = jnp.maximum(xq @ w1q + p["b1"], 0.0)
    mean = jnp.mean(h, axis=-1, keepdims=True)
    var = jnp.mean((h - mean) ** 2, axis=-1, keepdims=True)
    h = (h - mean) / jnp.sqrt(var + 1e-5) * p["gamma"] + p["beta"]
    h2 = jax.nn.sigmoid(h @ p["w2"] + p["b2"])
    return jax.nn.softmax(h2 @ p["w3"] + p["b3"], axis=1)


if __name__ == "__main__":
    key = jax.random.PRNGKey(0)
    k_x, k_p, k_x2 = jax.random.split(key, 3)

    batch, input_size, output_size = 8, 32, 4
    x = jax.random.normal(k_x, (batch, input_size), jnp.float32)
    params = init_params(k_p, input_size, output_size)

    out = jax.block_until_ready(net_forward(x, params))
    ref = _reference_forward(x, params)
    assert out.shape == (batch, output_size)
    assert jnp.allclose(out, ref, atol=2e-2, rtol=2e-2)
    assert jnp.allclose(jnp.sum(out, axis=1), 1.0, atol=1e-3)

    # Larger batch: exercises multi-step grid, pipelining and padded-row slicing.
    batch2 = 1000
    x2 = jax.random.normal(k_x2, (batch2, input_size), jnp.float32)
    out2 = jax.block_until_ready(net_forward(x2, params))
    ref2 = _reference_forward(x2, params)
    assert out2.shape == (batch2, output_size)
    assert jnp.allclose(out2, ref2, atol=2e-2, rtol=2e-2)
    assert jnp.allclose(jnp.sum(out2, axis=1), 1.0, atol=1e-3)

    print("KERNEL_OK")
</pallas_src>

<mosaic_0001>
module attributes {stable_mosaic.version = 11 : i64} {
  func.func @_net_kernel(%arg0: i32, %arg1: memref<32x128xbf16, #tpu.memory_space<vmem>>, %arg2: memref<12x32xbf16, #tpu.memory_space<vmem>>, %arg3: memref<12x1xf32, #tpu.memory_space<vmem>>, %arg4: memref<6x12xbf16, #tpu.memory_space<vmem>>, %arg5: memref<6x1xf32, #tpu.memory_space<vmem>>, %arg6: memref<4x6xbf16, #tpu.memory_space<vmem>>, %arg7: memref<4x1xf32, #tpu.memory_space<vmem>>, %arg8: memref<4x128xf32, #tpu.memory_space<vmem>>) attributes {dimension_semantics = [#tpu.dimension_semantics<parallel>], iteration_bounds = array<i64: 1>, scalar_prefetch = 0 : i64, scratch_operands = 0 : i64, tpu.core_type = #tpu.core_type<tc>, window_params = [{transform_indices = @transform_0, window_bounds = array<i64: 32, 128>}, {pipeline_mode = #tpu.pipeline_mode<synchronous>, transform_indices = @transform_1, window_bounds = array<i64: 12, 32>}, {pipeline_mode = #tpu.pipeline_mode<synchronous>, transform_indices = @transform_2, window_bounds = array<i64: 12, 1>}, {pipeline_mode = #tpu.pipeline_mode<synchronous>, transform_indices = @transform_3, window_bounds = array<i64: 6, 12>}, {pipeline_mode = #tpu.pipeline_mode<synchronous>, transform_indices = @transform_4, window_bounds = array<i64: 6, 1>}, {pipeline_mode = #tpu.pipeline_mode<synchronous>, transform_indices = @transform_5, window_bounds = array<i64: 4, 6>}, {pipeline_mode = #tpu.pipeline_mode<synchronous>, transform_indices = @transform_6, window_bounds = array<i64: 4, 1>}, {transform_indices = @transform_7, window_bounds = array<i64: 4, 128>}]} {
    %c0 = arith.constant 0 : index
    %c0_0 = arith.constant 0 : index
    %0 = vector.load %arg2[%c0, %c0_0] : memref<12x32xbf16, #tpu.memory_space<vmem>>, vector<12x32xbf16>
    %c0_1 = arith.constant 0 : index
    %c0_2 = arith.constant 0 : index
    %1 = vector.load %arg1[%c0_1, %c0_2] : memref<32x128xbf16, #tpu.memory_space<vmem>>, vector<32x128xbf16>
    %cst = arith.constant dense<0.000000e+00> : vector<12x128xf32>
    %2 = tpu.matmul %0, %1, %cst {dimension_numbers = #tpu.dot_dimension_numbers<[1], [0], [0], [1], [0, 0, 1, 1], [], []>} : vector<12x32xbf16>, vector<32x128xbf16>, vector<12x128xf32> -> vector<12x128xf32>
    %c0_3 = arith.constant 0 : index
    %c0_4 = arith.constant 0 : index
    %3 = vector.load %arg3[%c0_3, %c0_4] : memref<12x1xf32, #tpu.memory_space<vmem>>, vector<12x1xf32>
    %4 = vector.broadcast %3 : vector<12x1xf32> to vector<12x128xf32>
    %5 = arith.addf %2, %4 : vector<12x128xf32>
    %cst_5 = arith.constant 0.000000e+00 : f32
    %6 = vector.broadcast %cst_5 : f32 to vector<12x128xf32>
    %7 = arith.maximumf %5, %6 : vector<12x128xf32>
    %cst_6 = arith.constant dense<0.000000e+00> : vector<128xf32>
    %8 = vector.multi_reduction <add>, %7, %cst_6 [0] : vector<12x128xf32> to vector<128xf32>
    %9 = vector.shape_cast %8 : vector<128xf32> to vector<1x128xf32>
    %cst_7 = arith.constant 1.200000e+01 : f32
    %10 = vector.broadcast %cst_7 : f32 to vector<1x128xf32>
    %11 = arith.divf %9, %10 : vector<1x128xf32>
    %12 = vector.broadcast %11 : vector<1x128xf32> to vector<12x128xf32>
    %13 = arith.subf %7, %12 : vector<12x128xf32>
    %14 = arith.mulf %13, %13 : vector<12x128xf32>
    %cst_8 = arith.constant dense<0.000000e+00> : vector<128xf32>
    %15 = vector.multi_reduction <add>, %14, %cst_8 [0] : vector<12x128xf32> to vector<128xf32>
    %16 = vector.shape_cast %15 : vector<128xf32> to vector<1x128xf32>
    %cst_9 = arith.constant 1.200000e+01 : f32
    %17 = vector.broadcast %cst_9 : f32 to vector<1x128xf32>
    %18 = arith.divf %16, %17 : vector<1x128xf32>
    %cst_10 = arith.constant 9.99999974E-6 : f32
    %19 = vector.broadcast %cst_10 : f32 to vector<1x128xf32>
    %20 = arith.addf %18, %19 : vector<1x128xf32>
    %21 = math.rsqrt %20 : vector<1x128xf32>
    %22 = vector.broadcast %21 : vector<1x128xf32> to vector<12x128xf32>
    %23 = arith.mulf %13, %22 : vector<12x128xf32>
    %24 = arith.truncf %23 : vector<12x128xf32> to vector<12x128xbf16>
    %c0_11 = arith.constant 0 : index
    %c0_12 = arith.constant 0 : index
    %25 = vector.load %arg4[%c0_11, %c0_12] : memref<6x12xbf16, #tpu.memory_space<vmem>>, vector<6x12xbf16>
    %cst_13 = arith.constant dense<0.000000e+00> : vector<6x128xf32>
    %26 = tpu.matmul %25, %24, %cst_13 {dimension_numbers = #tpu.dot_dimension_numbers<[1], [0], [0], [1], [0, 0, 1, 1], [], []>} : vector<6x12xbf16>, vector<12x128xbf16>, vector<6x128xf32> -> vector<6x128xf32>
    %c0_14 = arith.constant 0 : index
    %c0_15 = arith.constant 0 : index
    %27 = vector.load %arg5[%c0_14, %c0_15] : memref<6x1xf32, #tpu.memory_space<vmem>>, vector<6x1xf32>
    %28 = vector.broadcast %27 : vector<6x1xf32> to vector<6x128xf32>
    %29 = arith.addf %26, %28 : vector<6x128xf32>
    %cst_16 = arith.constant 5.000000e-01 : f32
    %30 = vector.broadcast %cst_16 : f32 to vector<6x128xf32>
    %31 = arith.mulf %30, %29 : vector<6x128xf32>
    %32 = math.tanh %31 : vector<6x128xf32>
    %cst_17 = arith.constant 1.000000e+00 : f32
    %33 = vector.broadcast %cst_17 : f32 to vector<6x128xf32>
    %34 = arith.addf %32, %33 : vector<6x128xf32>
    %cst_18 = arith.constant 5.000000e-01 : f32
    %35 = vector.broadcast %cst_18 : f32 to vector<6x128xf32>
    %36 = arith.mulf %35, %34 : vector<6x128xf32>
    %37 = arith.truncf %36 : vector<6x128xf32> to vector<6x128xbf16>
    %c0_19 = arith.constant 0 : index
    %c0_20 = arith.constant 0 : index
    %38 = vector.load %arg6[%c0_19, %c0_20] : memref<4x6xbf16, #tpu.memory_space<vmem>>, vector<4x6xbf16>
    %cst_21 = arith.constant dense<0.000000e+00> : vector<4x128xf32>
    %39 = tpu.matmul %38, %37, %cst_21 {dimension_numbers = #tpu.dot_dimension_numbers<[1], [0], [0], [1], [0, 0, 1, 1], [], []>} : vector<4x6xbf16>, vector<6x128xbf16>, vector<4x128xf32> -> vector<4x128xf32>
    %c0_22 = arith.constant 0 : index
    %c0_23 = arith.constant 0 : index
    %40 = vector.load %arg7[%c0_22, %c0_23] : memref<4x1xf32, #tpu.memory_space<vmem>>, vector<4x1xf32>
    %41 = vector.broadcast %40 : vector<4x1xf32> to vector<4x128xf32>
    %42 = arith.addf %39, %41 : vector<4x128xf32>
    %cst_24 = arith.constant dense<0xFF800000> : vector<128xf32>
    %43 = vector.multi_reduction <maximumf>, %42, %cst_24 [0] : vector<4x128xf32> to vector<128xf32>
    %44 = vector.shape_cast %43 : vector<128xf32> to vector<1x128xf32>
    %45 = vector.broadcast %44 : vector<1x128xf32> to vector<4x128xf32>
    %46 = arith.subf %42, %45 : vector<4x128xf32>
    %47 = math.exp %46 : vector<4x128xf32>
    %cst_25 = arith.constant dense<0.000000e+00> : vector<128xf32>
    %48 = vector.multi_reduction <add>, %47, %cst_25 [0] : vector<4x128xf32> to vector<128xf32>
    %49 = vector.shape_cast %48 : vector<128xf32> to vector<1x128xf32>
    %50 = vector.broadcast %49 : vector<1x128xf32> to vector<4x128xf32>
    %51 = arith.divf %47, %50 : vector<4x128xf32>
    %c0_26 = arith.constant 0 : index
    %c0_27 = arith.constant 0 : index
    %52 = vector.load %arg8[%c0_26, %c0_27] : memref<4x128xf32, #tpu.memory_space<vmem>>, vector<4x128xf32>
    tpu.vector_store %arg8[%c0_26, %c0_27], %51 {strides = array<i32>} : memref<4x128xf32, #tpu.memory_space<vmem>>, vector<4x128xf32>,
    return
  }
  func.func @transform_0(%arg0: i32) -> (i32, i32) {
    %c0_i32 = arith.constant 0 : i32
    %c0_i32_0 = arith.constant 0 : i32
    return %c0_i32, %arg0 : i32, i32
  }
  func.func @transform_1(%arg0: i32) -> (i32, i32) {
    %c0_i32 = arith.constant 0 : i32
    %c0_i32_0 = arith.constant 0 : i32
    %c0_i32_1 = arith.constant 0 : i32
    return %c0_i32, %c0_i32_0 : i32, i32
  }
  func.func @transform_2(%arg0: i32) -> (i32, i32) {
    %c0_i32 = arith.constant 0 : i32
    %c0_i32_0 = arith.constant 0 : i32
    %c0_i32_1 = arith.constant 0 : i32
    return %c0_i32, %c0_i32_0 : i32, i32
  }
  func.func @transform_3(%arg0: i32) -> (i32, i32) {
    %c0_i32 = arith.constant 0 : i32
    %c0_i32_0 = arith.constant 0 : i32
    %c0_i32_1 = arith.constant 0 : i32
    return %c0_i32, %c0_i32_0 : i32, i32
  }
  func.func @transform_4(%arg0: i32) -> (i32, i32) {
    %c0_i32 = arith.constant 0 : i32
    %c0_i32_0 = arith.constant 0 : i32
    %c0_i32_1 = arith.constant 0 : i32
    return %c0_i32, %c0_i32_0 : i32, i32
  }
  func.func @transform_5(%arg0: i32) -> (i32, i32) {
    %c0_i32 = arith.constant 0 : i32
    %c0_i32_0 = arith.constant 0 : i32
    %c0_i32_1 = arith.constant 0 : i32
    return %c0_i32, %c0_i32_0 : i32, i32
  }
  func.func @transform_6(%arg0: i32) -> (i32, i32) {
    %c0_i32 = arith.constant 0 : i32
    %c0_i32_0 = arith.constant 0 : i32
    %c0_i32_1 = arith.constant 0 : i32
    return %c0_i32, %c0_i32_0 : i32, i32
  }
  func.func @transform_7(%arg0: i32) -> (i32, i32) {
    %c0_i32 = arith.constant 0 : i32
    %c0_i32_0 = arith.constant 0 : i32
    return %c0_i32, %arg0 : i32, i32
  }
}

</mosaic_0001>

<llo_original>
// kernel: tpu_custom_call.1
$region0: #{tpu_custom_call.1}
  #allocation0 [shape = 'u32[]', space=smem, size = 0x4, offset = 0x4, fixed_abs, tag = 'smem constant byte address 0x4 - core index']
  #allocation1 [shape = 'u32[144,128]{1,0:T(1,128)}', space=vmem, size = 0x12000, scoped, tag = 'internal scratch']
  %s0 = inlined_call_operand.vmem [shape: bf16[32,128], index: 0, kind: input, shape index: {}]
  %s1 = inlined_call_operand.vmem [shape: bf16[12,32], index: 1, kind: input, shape index: {}]
  %s2 = inlined_call_operand.vmem [shape: f32[12,1], index: 2, kind: input, shape index: {}]
  %s3 = inlined_call_operand.vmem [shape: bf16[6,12], index: 3, kind: input, shape index: {}]
  %s4 = inlined_call_operand.vmem [shape: f32[6,1], index: 4, kind: input, shape index: {}]
  %s5 = inlined_call_operand.vmem [shape: bf16[4,6], index: 5, kind: input, shape index: {}]
  %s6 = inlined_call_operand.vmem [shape: f32[4,1], index: 6, kind: input, shape index: {}]
  %s7 = inlined_call_operand.hbm [shape: f32[4,128], index: 7, kind: output, shape index: {}]
  %s8 = sld [smem:[#allocation0]]
  $region38: #{tpu_custom_call.1} parent=0
    _
  %s10 = ssub.s32 1, %s8
  %s11 = scalar_select 0, %s10, %s8
  $region1: #{tpu_custom_call.1} parent=0
    #allocation2 [shape = 'u8[2048]{0}', space=vmem, size = 0x800, scoped, tag = 'output window, operand 0, single buffered']
    #allocation3 [shape = 's32[1]{0}', space=sflag, size = 0x4, scoped, tag = 'scoped memory for tpu_custom_call.1']
    %12 = vsyncpa [#allocation3], 0
    // Predicated region
    $region2: #{tpu_custom_call.1} parent=1 // pred_check
      _
    $region3: #{tpu_custom_call.1} parent=1 // pred_check_branch
      %14 = sbr.rel (0) target = $region5
    $region4: #{tpu_custom_call.1} parent=1 // pred_region
      _
    $region5: #{tpu_custom_call.1} parent=1 // pred_fallthru
      _
    // Predicated region
    $region6: #{tpu_custom_call.1} parent=1 // pred_check
      _
    $region7: #{tpu_custom_call.1} parent=1 // pred_check_branch
      %16 = sbr.rel (0) target = $region9
    $region8: #{tpu_custom_call.1} parent=1 // pred_region
      _
    $region9: #{tpu_custom_call.1} parent=1 // pred_fallthru
      _
    // Predicated region
    $region10: #{tpu_custom_call.1} parent=1 // pred_check
      _
    $region11: #{tpu_custom_call.1} parent=1 // pred_check_branch
      %18 = sbr.rel (0) target = $region13
    $region12: #{tpu_custom_call.1} parent=1 // pred_region
      _
    $region13: #{tpu_custom_call.1} parent=1 // pred_fallthru
      _
    // Predicated region
    $region14: #{tpu_custom_call.1} parent=1 // pred_check
      _
    $region15: #{tpu_custom_call.1} parent=1 // pred_check_branch
      %20 = sbr.rel (0) target = $region17
    $region16: #{tpu_custom_call.1} parent=1 // pred_region
      _
    $region17: #{tpu_custom_call.1} parent=1 // pred_fallthru
      _
    // Predicated region
    $region18: #{tpu_custom_call.1} parent=1 // pred_check
      _
    $region19: #{tpu_custom_call.1} parent=1 // pred_check_branch
      %22 = sbr.rel (0) target = $region21
    $region20: #{tpu_custom_call.1} parent=1 // pred_region
      _
    $region21: #{tpu_custom_call.1} parent=1 // pred_fallthru
      _
    // Predicated region
    $region22: #{tpu_custom_call.1} parent=1 // pred_check
      _
    $region23: #{tpu_custom_call.1} parent=1 // pred_check_branch
      %24 = sbr.rel (0) target = $region25
    $region24: #{tpu_custom_call.1} parent=1 // pred_region
      _
    $region25: #{tpu_custom_call.1} parent=1 // pred_fallthru
      _
    // Predicated region
    $region26: #{tpu_custom_call.1} parent=1 // pred_check
      _
    $region27: #{tpu_custom_call.1} parent=1 // pred_check_branch
      %26 = sbr.rel (0) target = $region29
    $region28: #{tpu_custom_call.1} parent=1 // pred_region
      _
    $region29: #{tpu_custom_call.1} parent=1 // pred_fallthru
      _
    %v28 = vld [vmem:[%s1] sm:$0xf]
    %v29 = vld [vmem:[%s1 + $0x4] sm:$0x3]
    %v30 = vld [vmem:[%s0] sm:$0xf]
    %v31 = vld [vmem:[%s0 + $0x4] sm:$0xf]
    %v32 = vld [vmem:[%s0 + $0x8] sm:$0xf]
    %v33 = vld [vmem:[%s0 + $0xc] sm:$0xf]
    %v34 = vld [vmem:[%s2] sm:$0xff]
    %v35 = vld [vmem:[%s2 + $0x8] sm:$0xf]
    %37 = vset.pattern.permute.xlu0 0
    %38 = vperm.xlu0 %37, %v34
    %v39 = vpop.permute.xlu0 %38
    %42 = vset.pattern.permute.xlu0 0
    %43 = vperm.xlu0 %42, %v35
    %v44 = vpop.permute.xlu0 %43
    %v48 = vunpack.c.l.b16 %v28
    %v49 = vunpack.c.l.b16 %v29
    %v50 = vpack.c.b16 %v49, %v48
    %v55 = vunpack.c.l.b16 %v30
    %v56 = vunpack.c.l.b16 %v31
    %v57 = vunpack.c.l.b16 %v32
    %v58 = vunpack.c.l.b16 %v33
    %v59 = vpack.c.b16 %v56, %v55
    %v60 = vpack.c.b16 %v58, %v57
    %vm63 = vcmask 261120
    %v65 = vsel %vm63, %v50, 0
    %67 = vmatprep.subr.bf16.mxu0 0
    %68 = vmatpush1.bf16.msra.mxu0 0
    %69 = vmatprep.subr.bf16.mxu0 0
    %70 = vmatpush1.bf16.msra.mxu0 0
    %71 = vmatprep.subr.bf16.mxu0 0
    %72 = vmatpush1.bf16.msra.mxu0 0
    %73 = vmatprep.subr.bf16.mxu0 0
    %74 = vmatpush1.bf16.msra.mxu0 0
    %75 = vmatprep.subr.bf16.mxu0 0
    %76 = vmatpush1.bf16.msra.mxu0 0
    %77 = vmatprep.subr.bf16.mxu0 0
    %78 = vmatpush1.bf16.msra.mxu0 0
    %79 = vmatprep.subr.bf16.mxu0 0
    %80 = vmatpush1.bf16.msra.mxu0 %v60
    %81 = vmatprep.subr.bf16.mxu0 0
    %82 = vmatpush1.bf16.msra.mxu0 %v59
    %83 = vmatprep.subr.bf16.mxu0 0
    %84 = vmatpush2.bf16.msra.mxu0 0
    %85 = vmatprep.subr.bf16.mxu0 0
    %86 = vmatpush2.bf16.msra.mxu0 0
    %87 = vmatprep.subr.bf16.mxu0 0
    %88 = vmatpush2.bf16.msra.mxu0 0
    %89 = vmatprep.subr.bf16.mxu0 0
    %90 = vmatpush2.bf16.msra.mxu0 0
    %91 = vmatprep.subr.bf16.mxu0 0
    %92 = vmatpush2.bf16.msra.mxu0 0
    %93 = vmatprep.subr.bf16.mxu0 0
    %94 = vmatpush2.bf16.msra.mxu0 0
    %95 = vmatprep.subr.bf16.mxu0 0
    %96 = vmatpush2.bf16.msra.mxu0 0
    %97 = vmatprep.subr.bf16.mxu0 0
    %98 = vmatpush2.bf16.msra.mxu0 0
    %99 = vmatprep.mubr.bf16.mxu0 0
    %100 = vmatmul.mubr.bf16.gmra.mxu0 %v65
    %v101 = vpop.f32.mrf.mxu0
    %v102 = vadd.f32 %v39, %v101
    %v103 = vpop.f32.mrf.mxu0
    %v104 = vpop.f32.mrf.mxu0
    %v105 = vadd.f32 %v44, %v104
    %v106 = vpop.f32.mrf.mxu0
    %107 = vdwg.mxu0
    %v108 = vmax.f32 %v102, 0.0
    %v109 = vmax.f32 %v105, 0.0
    %vm110 = vcmask 1043456
    %v111 = vsel %vm110, %v109, 0.0
    %v112 = vadd.f32 %v108, %v111
    %v113 = vrot.slane %v112, 4
    %v114 = vadd.f32 %v112, %v113
    %v115 = vrot.slane %v114, 2
    %v116 = vadd.f32 %v114, %v115
    %v117 = vrot.slane %v116, 1
    %v118 = vadd.f32 %v116, %v117
    %v119 = vrcp.pop 12.0
    %v120 = vmul.f32 %v118, %v119
    %v121 = vsub.f32 %v108, %v120
    %v122 = vsub.f32 %v109, %v120
    %v123 = vmul.f32 %v121, %v121
    %v124 = vmul.f32 %v122, %v122
    %v125 = vsel %vm110, %v124, 0.0
    %v126 = vadd.f32 %v123, %v125
    %v127 = vrot.slane %v126, 4
    %v128 = vadd.f32 %v126, %v127
    %v129 = vrot.slane %v128, 2
    %v130 = vadd.f32 %v128, %v129
    %v131 = vrot.slane %v130, 1
    %v132 = vadd.f32 %v130, %v131
    %v133 = vmul.f32 %v132, %v119
    %v134 = vadd.f32 %v133, 1e-05
    %v135 = vrsqrt.pop %v134
    %v136 = vmul.f32 %v121, %v135
    %v137 = vmul.f32 %v122, %v135
    %v138 = vpack.c.bf16 %v137, %v136
    %v139 = vld [vmem:[%s3] sm:$0x7]
    %v140 = vld [vmem:[%s4] sm:$0x3f]
    %142 = vset.pattern.permute.xlu0 0
    %143 = vperm.xlu0 %142, %v140
    %v144 = vpop.permute.xlu0 %143
    %vm146 = vcmask 97280
    %v148 = vsel %vm146, %v139, 0
    %vm150 = vcmask 1045504
    %v152 = vsel %vm150, %v138, 0
    %154 = vmatprep.subr.bf16.mxu0 0
    %155 = vmatpush1.bf16.msra.mxu0 0
    %156 = vmatprep.subr.bf16.mxu0 0
    %157 = vmatpush1.bf16.msra.mxu0 0
    %158 = vmatprep.subr.bf16.mxu0 0
    %159 = vmatpush1.bf16.msra.mxu0 0
    %160 = vmatprep.subr.bf16.mxu0 0
    %161 = vmatpush1.bf16.msra.mxu0 0
    %162 = vmatprep.subr.bf16.mxu0 0
    %163 = vmatpush1.bf16.msra.mxu0 0
    %164 = vmatprep.subr.bf16.mxu0 0
    %165 = vmatpush1.bf16.msra.mxu0 0
    %166 = vmatprep.subr.bf16.mxu0 0
    %167 = vmatpush1.bf16.msra.mxu0 0
    %168 = vmatprep.subr.bf16.mxu0 0
    %169 = vmatpush1.bf16.msra.mxu0 %v152
    %170 = vmatprep.subr.bf16.mxu0 0
    %171 = vmatpush2.bf16.msra.mxu0 0
    %172 = vmatprep.subr.bf16.mxu0 0
    %173 = vmatpush2.bf16.msra.mxu0 0
    %174 = vmatprep.subr.bf16.mxu0 0
    %175 = vmatpush2.bf16.msra.mxu0 0
    %176 = vmatprep.subr.bf16.mxu0 0
    %177 = vmatpush2.bf16.msra.mxu0 0
    %178 = vmatprep.subr.bf16.mxu0 0
    %179 = vmatpush2.bf16.msra.mxu0 0
    %180 = vmatprep.subr.bf16.mxu0 0
    %181 = vmatpush2.bf16.msra.mxu0 0
    %182 = vmatprep.subr.bf16.mxu0 0
    %183 = vmatpush2.bf16.msra.mxu0 0
    %184 = vmatprep.subr.bf16.mxu0 0
    %185 = vmatpush2.bf16.msra.mxu0 0
    %186 = vmatprep.mubr.bf16.mxu0 0
    %187 = vmatmul.mubr.bf16.gmra.mxu0 %v148
    %v188 = vpop.f32.mrf.mxu0
    %v189 = vadd.f32 %v144, %v188
    %v190 = vpop.f32.mrf.mxu0
    %v191 = vpop.f32.mrf.mxu0
    %v192 = vpop.f32.mrf.mxu0
    %193 = vdwg.mxu0
    %v194 = vmul.f32 %v189, 0.5
    %v195 = vtanh.pop %v194
    %v196 = vadd.f32 %v195, 1.0
    %v197 = vmul.f32 %v196, 0.5
    %v198 = vpack.c.bf16 %v197, %v197
    %v199 = vld [vmem:[%s5] sm:$0x3]
    %v200 = vld [vmem:[%s6] sm:$0xf]
    %202 = vset.pattern.permute.xlu0 0
    %203 = vperm.xlu0 %202, %v200
    %v204 = vpop.permute.xlu0 %203
    %vm206 = vcmask 48128
    %v208 = vsel %vm206, %v199, 0
    %vm210 = vcmask 1042432
    %v212 = vsel %vm210, %v198, 0
    %214 = vmatprep.subr.bf16.mxu0 0
    %215 = vmatpush1.bf16.msra.mxu0 0
    %216 = vmatprep.subr.bf16.mxu0 0
    %217 = vmatpush1.bf16.msra.mxu0 0
    %218 = vmatprep.subr.bf16.mxu0 0
    %219 = vmatpush1.bf16.msra.mxu0 0
    %220 = vmatprep.subr.bf16.mxu0 0
    %221 = vmatpush1.bf16.msra.mxu0 0
    %222 = vmatprep.subr.bf16.mxu0 0
    %223 = vmatpush1.bf16.msra.mxu0 0
    %224 = vmatprep.subr.bf16.mxu0 0
    %225 = vmatpush1.bf16.msra.mxu0 0
    %226 = vmatprep.subr.bf16.mxu0 0
    %227 = vmatpush1.bf16.msra.mxu0 0
    %228 = vmatprep.subr.bf16.mxu0 0
    %229 = vmatpush1.bf16.msra.mxu0 %v212
    %230 = vmatprep.subr.bf16.mxu0 0
    %231 = vmatpush2.bf16.msra.mxu0 0
    %232 = vmatprep.subr.bf16.mxu0 0
    %233 = vmatpush2.bf16.msra.mxu0 0
    %234 = vmatprep.subr.bf16.mxu0 0
    %235 = vmatpush2.bf16.msra.mxu0 0
    %236 = vmatprep.subr.bf16.mxu0 0
    %237 = vmatpush2.bf16.msra.mxu0 0
    %238 = vmatprep.subr.bf16.mxu0 0
    %239 = vmatpush2.bf16.msra.mxu0 0
    %240 = vmatprep.subr.bf16.mxu0 0
    %241 = vmatpush2.bf16.msra.mxu0 0
    %242 = vmatprep.subr.bf16.mxu0 0
    %243 = vmatpush2.bf16.msra.mxu0 0
    %244 = vmatprep.subr.bf16.mxu0 0
    %245 = vmatpush2.bf16.msra.mxu0 0
    %246 = vmatprep.mubr.bf16.mxu0 0
    %247 = vmatmul.mubr.bf16.gmra.mxu0 %v208
    %v248 = vpop.f32.mrf.mxu0
    %v249 = vadd.f32 %v204, %v248
    %v250 = vpop.f32.mrf.mxu0
    %v251 = vpop.f32.mrf.mxu0
    %v252 = vpop.f32.mrf.mxu0
    %253 = vdwg.mxu0
    %v254 = vsel %vm110, %v249, -inf
    %v255 = vrot.slane %v254, 4
    %v256 = vmax.f32 %v254, %v255
    %v257 = vrot.slane %v256, 2
    %v258 = vmax.f32 %v256, %v257
    %v259 = vrot.slane %v258, 1
    %v260 = vmax.f32 %v258, %v259
    %v261 = vsub.f32 %v249, %v260
    %v262 = vmul.f32 %v261, 1.442695
    %v263 = vpow.pop %v262
    %v264 = vsel %vm110, %v263, 0.0
    %v265 = vrot.slane %v264, 4
    %v266 = vadd.f32 %v264, %v265
    %v267 = vrot.slane %v266, 2
    %v268 = vadd.f32 %v266, %v267
    %v269 = vrot.slane %v268, 1
    %v270 = vadd.f32 %v268, %v269
    %v271 = vrcp.pop %v270
    %v272 = vmul.f32 %v263, %v271
    %273 = vst [vmem:[#allocation2] sm:$0xf] %v272
    // Predicated region
    $region30: #{tpu_custom_call.1} parent=1 // pred_check
      _
    $region31: #{tpu_custom_call.1} parent=1 // pred_check_branch
      %275 = sbr.rel (0) target = $region33
    $region32: #{tpu_custom_call.1} parent=1 // pred_region
      %s277 = ssub.s32 64, 64
      %278 = vsyncadd [#allocation3], %s277
      %s280 = sshll.u32 [#allocation2], 4
      %s281 = int_to_ptr.vmem [resolvable:$true] %s280
      %283 = dma.vmem_to_hbm [thread:$0]  %s281, 64, %s7, [#allocation3]
    $region33: #{tpu_custom_call.1} parent=1 // pred_fallthru
      _
    // Predicated region
    $region34: #{tpu_custom_call.1} parent=1 // pred_check
      _
    $region35: #{tpu_custom_call.1} parent=1 // pred_check_branch
      %285 = sbr.rel (0) target = $region37
    $region36: #{tpu_custom_call.1} parent=1 // pred_region
      %286 = dma.done [#allocation3], 64
    $region37: #{tpu_custom_call.1} parent=1 // pred_fallthru
      _
    %287 = vsyncpa [#allocation3], 1

</llo_original>
